<compile_context>
chip_gen: v7x
topology: tpu7x:2x2x1
jax: 0.10.0
libtpu: 0.0.40
codegen_flags: <defaults>
</compile_context>

<pallas_src>
import functools

import jax
import jax.numpy as jnp
from jax.experimental import pallas as pl
from jax.experimental.pallas import tpu as pltpu

_MIB = 1024 * 1024


def _round_up(x, m):
    return (x + m - 1) // m * m


def _vmem_capacity_bytes():
    try:
        info = pltpu.get_tpu_info()
        cap = getattr(info, "vmem_capacity_bytes", None)
        if cap:
            return int(cap)
    except Exception:
        pass
    return 64 * _MIB  # conservative fallback: v7x per-TensorCore VMEM


_VMEM_CAP = _vmem_capacity_bytes()
# ~105 MiB scoped limit on 128 MiB parts (v5e/v6e), ~52 MiB on 64 MiB v7x —
# always leaves headroom for Mosaic internal scratch.
_VMEM_LIMIT = min(int(_VMEM_CAP * 0.82), _VMEM_CAP - 8 * _MIB)
_PLAN_BUDGET = _VMEM_LIMIT - 2 * _MIB  # extra slack for small compiler temps


# --------------------------------------------------------------------------- #
# Kernels
# --------------------------------------------------------------------------- #
def _resident_kernel(x_ref, w1_ref, w2_ref, beff_ref, o_ref):
    # Whole (padded, pre-transposed) weights live in VMEM, fetched once.
    # No accumulator scratch: write the output tile directly.
    x = x_ref[...]
    cd = w1_ref.dtype
    h = jnp.dot(x.astype(cd), w1_ref[...], preferred_element_type=jnp.float32)
    y = jnp.dot(h.astype(cd), w2_ref[...], preferred_element_type=jnp.float32)
    o_ref[...] = (x.astype(jnp.float32) + beff_ref[...] + y).astype(o_ref.dtype)


def _stream_kernel(x_ref, w1_ref, w2_ref, beff_ref, o_ref, acc_ref):
    # Hidden (2*dim) axis split into nk chunks; f32 accumulator carries the
    # partial products.  Residual + folded bias are rolled into the k==0 init.
    k = pl.program_id(1)
    x = x_ref[...]
    cd = w1_ref.dtype

    @pl.when(k == 0)
    def _():
        acc_ref[...] = x.astype(jnp.float32) + beff_ref[...]

    h = jnp.dot(x.astype(cd), w1_ref[...], preferred_element_type=jnp.float32)
    acc_ref[...] += jnp.dot(h.astype(cd), w2_ref[...],
                            preferred_element_type=jnp.float32)

    @pl.when(k == pl.num_programs(1) - 1)
    def _():
        o_ref[...] = acc_ref[...].astype(o_ref.dtype)


def _affine_kernel(x_ref, w_ref, beff_ref, o_ref):
    # Fused affine path: out = x + x @ (W2 @ W1)^T + (W2 @ b1 + b2).
    x = x_ref[...]
    y = jnp.dot(x.astype(w_ref.dtype), w_ref[...],
                preferred_element_type=jnp.float32)
    o_ref[...] = (x.astype(jnp.float32) + beff_ref[...] + y).astype(o_ref.dtype)


# --------------------------------------------------------------------------- #
# Planning helpers (pure Python, trace-time)
# --------------------------------------------------------------------------- #
def _pick_tm(m, target):
    """Row-tile size: multiple of 16 and an even/balanced tile count so the
    megacore 'parallel' axis keeps both TCs busy (v7x) without a dead tail."""
    m16 = _round_up(max(m, 1), 16)
    if m16 <= target:
        return m16
    nt = -(-m // target)
    nt = _round_up(nt, 2)
    return _round_up(-(-m // nt), 16)


def _act_bytes(tm, dim_p, tk, x_itemsize):
    b = 4 * tm * dim_p * x_itemsize   # x + out tiles, double-buffered
    b += dim_p * 4                    # folded bias row (f32)
    b += tm * tk * 4                  # f32 hidden temp (tm, tk)
    b += tm * dim_p * 4               # f32 accumulator / epilogue temp
    return b


# --------------------------------------------------------------------------- #
# Wrapper
# --------------------------------------------------------------------------- #
@functools.partial(jax.jit, static_argnames=("fuse_affine", "compute_dtype"))
def hypernetwork_forward(x, w1, b1, w2, b2, *, fuse_affine=False,
                         compute_dtype=None):
    """out = x + linear2(linear1(x))  (PyTorch HypernetworkModule.forward).

    x:  [..., dim] activations
    w1: [2*dim, dim],  b1: [2*dim]    (torch nn.Linear layout: [out, in])
    w2: [dim, 2*dim],  b2: [dim]

    fuse_affine:   collapse the two bias-free linears into one dim x dim matmul
                   (exact in real arithmetic; ~4x fewer FLOPs / weight bytes).
    compute_dtype: optional MXU dtype (e.g. jnp.bfloat16); accumulation and the
                   residual/bias add stay f32.
    """
    orig_shape = x.shape
    dim = orig_shape[-1]
    hidden = 2 * dim
    m = 1
    for s in orig_shape[:-1]:
        m *= s

    x_itemsize = jnp.dtype(x.dtype).itemsize
    cd = jnp.dtype(compute_dtype) if compute_dtype is not None else jnp.dtype(x.dtype)
    w_itemsize = cd.itemsize

    dim_p = _round_up(dim, 128)         # lane-dense feature dim
    hidden_p = _round_up(hidden, 128)
    budget = _PLAN_BUDGET

    # Fold biases in f32: (x@W1^T + b1)@W2^T + b2 == x@W1^T@W2^T + (W2@b1 + b2)
    b_eff = (jnp.dot(w2.astype(jnp.float32), b1.astype(jnp.float32))
             + b2.astype(jnp.float32)).reshape(1, dim)
    beffp = jnp.pad(b_eff, ((0, 0), (0, dim_p - dim))) if dim_p != dim else b_eff

    x2d = x.reshape(m, dim)

    # -------------------- optional fused affine path ------------------------
    if fuse_affine:
        for tm_t in (512, 256, 128):
            tm = _pick_tm(m, tm_t)
            need = (dim_p * dim_p * w_itemsize            # resident fused weight
                    + _act_bytes(tm, dim_p, 0, x_itemsize))
            if need <= budget:
                # W = W1^T @ W2^T = (W2 @ W1)^T, computed in f32 once.
                w_fused = jnp.dot(w1.astype(jnp.float32).T,
                                  w2.astype(jnp.float32).T).astype(cd)
                wp = jnp.pad(w_fused, ((0, dim_p - dim), (0, dim_p - dim)))
                m_p = _round_up(m, tm)
                xp = x2d
                if m_p != m or dim_p != dim:
                    xp = jnp.pad(x2d, ((0, m_p - m), (0, dim_p - dim)))
                cost = pl.CostEstimate(
                    flops=2 * m * dim * dim, transcendentals=0,
                    bytes_accessed=2 * m * dim * x_itemsize
                    + dim * dim * w_itemsize + dim * 4)
                out2d = pl.pallas_call(
                    _affine_kernel,
                    out_shape=jax.ShapeDtypeStruct((m_p, dim_p), x.dtype),
                    grid_spec=pltpu.PrefetchScalarGridSpec(
                        num_scalar_prefetch=0,
                        grid=(m_p // tm,),
                        in_specs=[
                            pl.BlockSpec((tm, dim_p), lambda i: (i, 0)),
                            pl.BlockSpec((dim_p, dim_p), lambda i: (0, 0),
                                         pipeline_mode=pl.Buffered(1)),
                            pl.BlockSpec((1, dim_p), lambda i: (0, 0),
                                         pipeline_mode=pl.Buffered(1)),
                        ],
                        out_specs=pl.BlockSpec((tm, dim_p), lambda i: (i, 0)),
                    ),
                    compiler_params=pltpu.CompilerParams(
                        dimension_semantics=("parallel",),
                        vmem_limit_bytes=_VMEM_LIMIT,
                    ),
                    cost_estimate=cost,
                )(xp, wp, beffp)
                return out2d[:m, :dim].reshape(orig_shape)
        # TODO(synk): streaming variant of the fused dim x dim matmul for dims
        # whose fused weight does not fit resident VMEM; falls back to the
        # two-matmul path below (still correct, just without the 4x saving).

    # -------------------- two-matmul path (module-faithful) -----------------
    # Pre-transpose ONCE so both in-kernel dots are MXU-native NN matmuls.
    w1t = w1.T.astype(cd)   # [dim, hidden]
    w2t = w2.T.astype(cd)   # [hidden, dim]

    plan = None
    # Resident: whole padded weights in VMEM, single-buffered, fetched once.
    resident_w = 2 * dim_p * hidden_p * w_itemsize
    for tm_t in (512, 256, 128):
        tm = _pick_tm(m, tm_t)
        if resident_w + _act_bytes(tm, dim_p, hidden_p, x_itemsize) <= budget:
            plan = ("resident", tm, hidden_p)
            break

    if plan is None:
        # Streaming: larger row tiles amortize weight re-reads; hidden-chunk tk
        # is derived from the remaining VMEM budget (double-buffered chunks).
        for tm_t in (1024, 512, 256, 128):
            tm = _pick_tm(m, tm_t)
            base = _act_bytes(tm, dim_p, 0, x_itemsize)
            if budget <= base:
                continue
            denom = tm * 4 + 4 * dim_p * w_itemsize   # h temp + 2x2 weight bufs
            tk = ((budget - base) // denom // 128) * 128
            tk = min(tk, hidden_p)
            if tk >= 256 or (tk >= 128 and tm_t == 128):
                plan = ("stream", tm, int(tk))
                break
        if plan is None:
            plan = ("stream", _pick_tm(m, 128), 128)   # last resort

    mode, tm, tk = plan
    hidden_pad = hidden_p if mode == "resident" else _round_up(hidden, tk)
    m_p = _round_up(m, tm)

    if m_p != m or dim_p != dim:
        x2d = jnp.pad(x2d, ((0, m_p - m), (0, dim_p - dim)))
    if dim_p != dim or hidden_pad != hidden:
        w1tp = jnp.pad(w1t, ((0, dim_p - dim), (0, hidden_pad - hidden)))
        w2tp = jnp.pad(w2t, ((0, hidden_pad - hidden), (0, dim_p - dim)))
    else:
        w1tp, w2tp = w1t, w2t

    cost = pl.CostEstimate(
        flops=4 * m * dim * hidden,          # two matmuls
        transcendentals=0,
        bytes_accessed=2 * m * dim * x_itemsize
        + (w1.size + w2.size) * w_itemsize + dim * 4)

    if mode == "resident":
        out2d = pl.pallas_call(
            _resident_kernel,
            out_shape=jax.ShapeDtypeStruct((m_p, dim_p), x.dtype),
            grid_spec=pltpu.PrefetchScalarGridSpec(
                num_scalar_prefetch=0,
                grid=(m_p // tm,),
                in_specs=[
                    pl.BlockSpec((tm, dim_p), lambda i: (i, 0)),
                    pl.BlockSpec((dim_p, hidden_pad), lambda i: (0, 0),
                                 pipeline_mode=pl.Buffered(1)),
                    pl.BlockSpec((hidden_pad, dim_p), lambda i: (0, 0),
                                 pipeline_mode=pl.Buffered(1)),
                    pl.BlockSpec((1, dim_p), lambda i: (0, 0),
                                 pipeline_mode=pl.Buffered(1)),
                ],
                out_specs=pl.BlockSpec((tm, dim_p), lambda i: (i, 0)),
            ),
            compiler_params=pltpu.CompilerParams(
                dimension_semantics=("parallel",),
                vmem_limit_bytes=_VMEM_LIMIT,
            ),
            cost_estimate=cost,
        )(x2d, w1tp, w2tp, beffp)
    else:
        nk = hidden_pad // tk
        out2d = pl.pallas_call(
            _stream_kernel,
            out_shape=jax.ShapeDtypeStruct((m_p, dim_p), x.dtype),
            grid_spec=pltpu.PrefetchScalarGridSpec(
                num_scalar_prefetch=0,
                grid=(m_p // tm, nk),
                in_specs=[
                    pl.BlockSpec((tm, dim_p), lambda i, k: (i, 0)),
                    pl.BlockSpec((dim_p, tk), lambda i, k: (0, k)),
                    pl.BlockSpec((tk, dim_p), lambda i, k: (k, 0)),
                    pl.BlockSpec((1, dim_p), lambda i, k: (0, 0),
                                 pipeline_mode=pl.Buffered(1)),
                ],
                out_specs=pl.BlockSpec((tm, dim_p), lambda i, k: (i, 0)),
                scratch_shapes=[pltpu.VMEM((tm, dim_p), jnp.float32)],
            ),
            compiler_params=pltpu.CompilerParams(
                dimension_semantics=("parallel", "arbitrary"),
                vmem_limit_bytes=_VMEM_LIMIT,
            ),
            cost_estimate=cost,
        )(x2d, w1tp, w2tp, beffp)

    return out2d[:m, :dim].reshape(orig_shape)


if __name__ == "__main__":
    batch, seq, dim = 2, 8, 32

    key = jax.random.PRNGKey(0)
    kx, kw1, kb1, kw2, kb2 = jax.random.split(key, 5)

    # Parameters mirroring the module (weights ~ N(0, 0.01)); biases made
    # nonzero (as from a loaded state_dict) to exercise the bias-fold path.
    x = jax.random.normal(kx, (batch, seq, dim), dtype=jnp.float32)
    w1 = 0.01 * jax.random.normal(kw1, (2 * dim, dim), dtype=jnp.float32)
    b1 = 0.01 * jax.random.normal(kb1, (2 * dim,), dtype=jnp.float32)
    w2 = 0.01 * jax.random.normal(kw2, (dim, 2 * dim), dtype=jnp.float32)
    b2 = 0.01 * jax.random.normal(kb2, (dim,), dtype=jnp.float32)

    # Pure-JAX reference of the module's forward.
    ref = x + ((jnp.einsum("bsd,ed->bse", x, w1) + b1) @ w2.T + b2)

    # Default (module-faithful) two-matmul path.
    out = jax.block_until_ready(hypernetwork_forward(x, w1, b1, w2, b2))
    assert out.shape == x.shape
    assert jnp.allclose(out, ref, atol=1e-5, rtol=1e-5), float(
        jnp.max(jnp.abs(out - ref)))

    # Fused affine path (single dim x dim matmul).
    out_fused = jax.block_until_ready(
        hypernetwork_forward(x, w1, b1, w2, b2, fuse_affine=True))
    assert jnp.allclose(out_fused, ref, atol=1e-5, rtol=1e-5), float(
        jnp.max(jnp.abs(out_fused - ref)))

    # bf16 MXU path (f32 accumulation / residual).
    out_bf16 = jax.block_until_ready(
        hypernetwork_forward(x, w1, b1, w2, b2, compute_dtype=jnp.bfloat16))
    assert jnp.allclose(out_bf16, ref, atol=1e-3, rtol=1e-3), float(
        jnp.max(jnp.abs(out_bf16 - ref)))

    print("KERNEL_OK")
</pallas_src>

<mosaic_0001>
module attributes {stable_mosaic.version = 11 : i64} {
  func.func @_resident_kernel(%arg0: i32, %arg1: memref<16x128xf32, #tpu.memory_space<vmem>>, %arg2: memref<128x128xf32, #tpu.memory_space<vmem>>, %arg3: memref<128x128xf32, #tpu.memory_space<vmem>>, %arg4: memref<1x128xf32, #tpu.memory_space<vmem>>, %arg5: memref<16x128xf32, #tpu.memory_space<vmem>>) attributes {dimension_semantics = [#tpu.dimension_semantics<parallel>], iteration_bounds = array<i64: 1>, scalar_prefetch = 0 : i64, scratch_operands = 0 : i64, tpu.core_type = #tpu.core_type<tc>, window_params = [{transform_indices = @transform_0, window_bounds = array<i64: 16, 128>}, {pipeline_mode = #tpu.pipeline_mode<synchronous>, transform_indices = @transform_1, window_bounds = array<i64: 128, 128>}, {pipeline_mode = #tpu.pipeline_mode<synchronous>, transform_indices = @transform_2, window_bounds = array<i64: 128, 128>}, {pipeline_mode = #tpu.pipeline_mode<synchronous>, transform_indices = @transform_3, window_bounds = array<i64: 1, 128>}, {transform_indices = @transform_4, window_bounds = array<i64: 16, 128>}]} {
    %c0 = arith.constant 0 : index
    %c0_0 = arith.constant 0 : index
    %0 = vector.load %arg1[%c0, %c0_0] : memref<16x128xf32, #tpu.memory_space<vmem>>, vector<16x128xf32>
    %c0_1 = arith.constant 0 : index
    %c0_2 = arith.constant 0 : index
    %1 = vector.load %arg2[%c0_1, %c0_2] : memref<128x128xf32, #tpu.memory_space<vmem>>, vector<128x128xf32>
    %cst = arith.constant dense<0.000000e+00> : vector<16x128xf32>
    %2 = tpu.matmul %0, %1, %cst {dimension_numbers = #tpu.dot_dimension_numbers<[1], [0], [0], [1], [0, 0, 1, 1], [], []>} : vector<16x128xf32>, vector<128x128xf32>, vector<16x128xf32> -> vector<16x128xf32>
    %c0_3 = arith.constant 0 : index
    %c0_4 = arith.constant 0 : index
    %3 = vector.load %arg3[%c0_3, %c0_4] : memref<128x128xf32, #tpu.memory_space<vmem>>, vector<128x128xf32>
    %cst_5 = arith.constant dense<0.000000e+00> : vector<16x128xf32>
    %4 = tpu.matmul %2, %3, %cst_5 {dimension_numbers = #tpu.dot_dimension_numbers<[1], [0], [0], [1], [0, 0, 1, 1], [], []>} : vector<16x128xf32>, vector<128x128xf32>, vector<16x128xf32> -> vector<16x128xf32>
    %c0_6 = arith.constant 0 : index
    %c0_7 = arith.constant 0 : index
    %5 = vector.load %arg4[%c0_6, %c0_7] : memref<1x128xf32, #tpu.memory_space<vmem>>, vector<1x128xf32>
    %6 = vector.broadcast %5 : vector<1x128xf32> to vector<16x128xf32>
    %7 = arith.addf %0, %6 : vector<16x128xf32>
    %8 = arith.addf %7, %4 : vector<16x128xf32>
    %c0_8 = arith.constant 0 : index
    %c0_9 = arith.constant 0 : index
    %9 = vector.load %arg5[%c0_8, %c0_9] : memref<16x128xf32, #tpu.memory_space<vmem>>, vector<16x128xf32>
    tpu.vector_store %arg5[%c0_8, %c0_9], %8 {strides = array<i32>} : memref<16x128xf32, #tpu.memory_space<vmem>>, vector<16x128xf32>,
    return
  }
  func.func @transform_0(%arg0: i32) -> (i32, i32) {
    %c0_i32 = arith.constant 0 : i32
    %c0_i32_0 = arith.constant 0 : i32
    return %arg0, %c0_i32 : i32, i32
  }
  func.func @transform_1(%arg0: i32) -> (i32, i32) {
    %c0_i32 = arith.constant 0 : i32
    %c0_i32_0 = arith.constant 0 : i32
    %c0_i32_1 = arith.constant 0 : i32
    return %c0_i32, %c0_i32_0 : i32, i32
  }
  func.func @transform_2(%arg0: i32) -> (i32, i32) {
    %c0_i32 = arith.constant 0 : i32
    %c0_i32_0 = arith.constant 0 : i32
    %c0_i32_1 = arith.constant 0 : i32
    return %c0_i32, %c0_i32_0 : i32, i32
  }
  func.func @transform_3(%arg0: i32) -> (i32, i32) {
    %c0_i32 = arith.constant 0 : i32
    %c0_i32_0 = arith.constant 0 : i32
    %c0_i32_1 = arith.constant 0 : i32
    return %c0_i32, %c0_i32_0 : i32, i32
  }
  func.func @transform_4(%arg0: i32) -> (i32, i32) {
    %c0_i32 = arith.constant 0 : i32
    %c0_i32_0 = arith.constant 0 : i32
    return %arg0, %c0_i32 : i32, i32
  }
}

</mosaic_0001>

<llo_original>
// kernel: hypernetwork_forward.1
$region0: #{hypernetwork_forward.1}
  #allocation0 [shape = 'u32[]', space=smem, size = 0x4, offset = 0x4, fixed_abs, tag = 'smem constant byte address 0x4 - core index']
  #allocation1 [shape = 'u32[144,128]{1,0:T(1,128)}', space=vmem, size = 0x12000, scoped, tag = 'internal scratch']
  %s0 = inlined_call_operand.vmem [shape: f32[16,128], index: 0, kind: input, shape index: {}]
  %s1 = inlined_call_operand.vmem [shape: f32[128,128], index: 1, kind: input, shape index: {}]
  %s2 = inlined_call_operand.vmem [shape: f32[128,128], index: 2, kind: input, shape index: {}]
  %s3 = inlined_call_operand.vmem [shape: f32[1,128], index: 3, kind: input, shape index: {}]
  %s4 = inlined_call_operand.vmem [shape: f32[16,128], index: 4, kind: output, shape index: {}]
  %s5 = sld [smem:[#allocation0]]
  $region26: #{hypernetwork_forward.1} parent=0
    _
  %s7 = ssub.s32 1, %s5
  %s8 = scalar_select 0, %s7, %s5
  // Predicated region
  $region2: #{hypernetwork_forward.1} parent=0 // pred_check
    _
  $region3: #{hypernetwork_forward.1} parent=0 // pred_check_branch
    %10 = sbr.rel (0) target = $region5
  $region4: #{hypernetwork_forward.1} parent=0 // pred_region
    _
  $region5: #{hypernetwork_forward.1} parent=0 // pred_fallthru
    _
  // Predicated region
  $region6: #{hypernetwork_forward.1} parent=0 // pred_check
    _
  $region7: #{hypernetwork_forward.1} parent=0 // pred_check_branch
    %12 = sbr.rel (0) target = $region9
  $region8: #{hypernetwork_forward.1} parent=0 // pred_region
    _
  $region9: #{hypernetwork_forward.1} parent=0 // pred_fallthru
    _
  // Predicated region
  $region10: #{hypernetwork_forward.1} parent=0 // pred_check
    _
  $region11: #{hypernetwork_forward.1} parent=0 // pred_check_branch
    %14 = sbr.rel (0) target = $region13
  $region12: #{hypernetwork_forward.1} parent=0 // pred_region
    _
  $region13: #{hypernetwork_forward.1} parent=0 // pred_fallthru
    _
  // Predicated region
  $region14: #{hypernetwork_forward.1} parent=0 // pred_check
    _
  $region15: #{hypernetwork_forward.1} parent=0 // pred_check_branch
    %16 = sbr.rel (0) target = $region17
  $region16: #{hypernetwork_forward.1} parent=0 // pred_region
    _
  $region17: #{hypernetwork_forward.1} parent=0 // pred_fallthru
    _
  %v17 = vld [vmem:[%s0] sm:$0xff]
  %v18 = vld [vmem:[%s0 + $0x8] sm:$0xff]
  %v19 = vld [vmem:[%s1] sm:$0xff]
  %v20 = vld [vmem:[%s1 + $0x8] sm:$0xff]
  %v21 = vld [vmem:[%s1 + $0x10] sm:$0xff]
  %v22 = vld [vmem:[%s1 + $0x18] sm:$0xff]
  %v23 = vld [vmem:[%s1 + $0x20] sm:$0xff]
  %v24 = vld [vmem:[%s1 + $0x28] sm:$0xff]
  %v25 = vld [vmem:[%s1 + $0x30] sm:$0xff]
  %v26 = vld [vmem:[%s1 + $0x38] sm:$0xff]
  %v27 = vld [vmem:[%s1 + $0x40] sm:$0xff]
  %v28 = vld [vmem:[%s1 + $0x48] sm:$0xff]
  %v29 = vld [vmem:[%s1 + $0x50] sm:$0xff]
  %v30 = vld [vmem:[%s1 + $0x58] sm:$0xff]
  %v31 = vld [vmem:[%s1 + $0x60] sm:$0xff]
  %v32 = vld [vmem:[%s1 + $0x68] sm:$0xff]
  %v33 = vld [vmem:[%s1 + $0x70] sm:$0xff]
  %v34 = vld [vmem:[%s1 + $0x78] sm:$0xff]
  %35 = vmatprep.subr.mxu0 0.0
  %36 = vmatpush1.msra.mxu0 %v19
  %37 = vmatprep.subr.mxu0 0.0
  %38 = vmatpush1.msra.mxu0 %v20
  %39 = vmatprep.subr.mxu0 0.0
  %40 = vmatpush1.msra.mxu0 %v21
  %41 = vmatprep.subr.mxu0 0.0
  %42 = vmatpush1.msra.mxu0 %v22
  %43 = vmatprep.subr.mxu0 0.0
  %44 = vmatpush1.msra.mxu0 %v23
  %45 = vmatprep.subr.mxu0 0.0
  %46 = vmatpush1.msra.mxu0 %v24
  %47 = vmatprep.subr.mxu0 0.0
  %48 = vmatpush1.msra.mxu0 %v25
  %49 = vmatprep.subr.mxu0 0.0
  %50 = vmatpush1.msra.mxu0 %v26
  %51 = vmatprep.subr.mxu0 0.0
  %52 = vmatpush1.msra.mxu0 %v27
  %53 = vmatprep.subr.mxu0 0.0
  %54 = vmatpush1.msra.mxu0 %v28
  %55 = vmatprep.subr.mxu0 0.0
  %56 = vmatpush1.msra.mxu0 %v29
  %57 = vmatprep.subr.mxu0 0.0
  %58 = vmatpush1.msra.mxu0 %v30
  %59 = vmatprep.subr.mxu0 0.0
  %60 = vmatpush1.msra.mxu0 %v31
  %61 = vmatprep.subr.mxu0 0.0
  %62 = vmatpush1.msra.mxu0 %v32
  %63 = vmatprep.subr.mxu0 0.0
  %64 = vmatpush1.msra.mxu0 %v33
  %65 = vmatprep.subr.mxu0 0.0
  %66 = vmatpush1.msra.mxu0 %v34
  %67 = vmatprep.subr.mxu0 0.0
  %68 = vmatpush1.msra.mxu0 0.0
  %69 = vmatprep.subr.mxu0 0.0
  %70 = vmatpush1.msra.mxu0 0.0
  %71 = vmatprep.subr.mxu0 0.0
  %72 = vmatpush1.msra.mxu0 0.0
  %73 = vmatprep.subr.mxu0 0.0
  %74 = vmatpush1.msra.mxu0 0.0
  %75 = vmatprep.subr.mxu0 0.0
  %76 = vmatpush1.msra.mxu0 0.0
  %77 = vmatprep.subr.mxu0 0.0
  %78 = vmatpush1.msra.mxu0 0.0
  %79 = vmatprep.subr.mxu0 0.0
  %80 = vmatpush1.msra.mxu0 0.0
  %81 = vmatprep.subr.mxu0 0.0
  %82 = vmatpush1.msra.mxu0 0.0
  %83 = vmatprep.subr.mxu0 0.0
  %84 = vmatpush1.msra.mxu0 0.0
  %85 = vmatprep.subr.mxu0 0.0
  %86 = vmatpush1.msra.mxu0 0.0
  %87 = vmatprep.subr.mxu0 0.0
  %88 = vmatpush1.msra.mxu0 0.0
  %89 = vmatprep.subr.mxu0 0.0
  %90 = vmatpush1.msra.mxu0 0.0
  %91 = vmatprep.subr.mxu0 0.0
  %92 = vmatpush1.msra.mxu0 0.0
  %93 = vmatprep.subr.mxu0 0.0
  %94 = vmatpush1.msra.mxu0 0.0
  %95 = vmatprep.subr.mxu0 0.0
  %96 = vmatpush1.msra.mxu0 0.0
  %97 = vmatprep.subr.mxu0 0.0
  %98 = vmatpush1.msra.mxu0 0.0
  %99 = vmatprep.mubr.f32.mxu0 0.0
  %100 = vmatmul.mubr.f32.gmra.mrb[0].mxu0 %v17
  %v101 = vpop.f32.mrb[0].mxu0
  %v102 = vadd.f32 0.0, %v101
  %v103 = vpop.f32.mrb[0].mxu0
  %104 = vmatprep.mubr.f32.mxu0 0.0
  %105 = vmatmul.mubr.f32.gmra.mrb[0].mxu0 %v18
  %v106 = vpop.f32.mrb[0].mxu0
  %v107 = vadd.f32 0.0, %v106
  %v108 = vpop.f32.mrb[0].mxu0
  %109 = vdwg.mxu0
  %v110 = vld [vmem:[%s2] sm:$0xff]
  %v111 = vld [vmem:[%s2 + $0x8] sm:$0xff]
  %v112 = vld [vmem:[%s2 + $0x10] sm:$0xff]
  %v113 = vld [vmem:[%s2 + $0x18] sm:$0xff]
  %v114 = vld [vmem:[%s2 + $0x20] sm:$0xff]
  %v115 = vld [vmem:[%s2 + $0x28] sm:$0xff]
  %v116 = vld [vmem:[%s2 + $0x30] sm:$0xff]
  %v117 = vld [vmem:[%s2 + $0x38] sm:$0xff]
  %v118 = vld [vmem:[%s2 + $0x40] sm:$0xff]
  %v119 = vld [vmem:[%s2 + $0x48] sm:$0xff]
  %v120 = vld [vmem:[%s2 + $0x50] sm:$0xff]
  %v121 = vld [vmem:[%s2 + $0x58] sm:$0xff]
  %v122 = vld [vmem:[%s2 + $0x60] sm:$0xff]
  %v123 = vld [vmem:[%s2 + $0x68] sm:$0xff]
  %v124 = vld [vmem:[%s2 + $0x70] sm:$0xff]
  %v125 = vld [vmem:[%s2 + $0x78] sm:$0xff]
  %126 = vmatprep.subr.mxu0 0.0
  %127 = vmatpush1.msra.mxu0 %v110
  %128 = vmatprep.subr.mxu0 0.0
  %129 = vmatpush1.msra.mxu0 %v111
  %130 = vmatprep.subr.mxu0 0.0
  %131 = vmatpush1.msra.mxu0 %v112
  %132 = vmatprep.subr.mxu0 0.0
  %133 = vmatpush1.msra.mxu0 %v113
  %134 = vmatprep.subr.mxu0 0.0
  %135 = vmatpush1.msra.mxu0 %v114
  %136 = vmatprep.subr.mxu0 0.0
  %137 = vmatpush1.msra.mxu0 %v115
  %138 = vmatprep.subr.mxu0 0.0
  %139 = vmatpush1.msra.mxu0 %v116
  %140 = vmatprep.subr.mxu0 0.0
  %141 = vmatpush1.msra.mxu0 %v117
  %142 = vmatprep.subr.mxu0 0.0
  %143 = vmatpush1.msra.mxu0 %v118
  %144 = vmatprep.subr.mxu0 0.0
  %145 = vmatpush1.msra.mxu0 %v119
  %146 = vmatprep.subr.mxu0 0.0
  %147 = vmatpush1.msra.mxu0 %v120
  %148 = vmatprep.subr.mxu0 0.0
  %149 = vmatpush1.msra.mxu0 %v121
  %150 = vmatprep.subr.mxu0 0.0
  %151 = vmatpush1.msra.mxu0 %v122
  %152 = vmatprep.subr.mxu0 0.0
  %153 = vmatpush1.msra.mxu0 %v123
  %154 = vmatprep.subr.mxu0 0.0
  %155 = vmatpush1.msra.mxu0 %v124
  %156 = vmatprep.subr.mxu0 0.0
  %157 = vmatpush1.msra.mxu0 %v125
  %158 = vmatprep.subr.mxu0 0.0
  %159 = vmatpush1.msra.mxu0 0.0
  %160 = vmatprep.subr.mxu0 0.0
  %161 = vmatpush1.msra.mxu0 0.0
  %162 = vmatprep.subr.mxu0 0.0
  %163 = vmatpush1.msra.mxu0 0.0
  %164 = vmatprep.subr.mxu0 0.0
  %165 = vmatpush1.msra.mxu0 0.0
  %166 = vmatprep.subr.mxu0 0.0
  %167 = vmatpush1.msra.mxu0 0.0
  %168 = vmatprep.subr.mxu0 0.0
  %169 = vmatpush1.msra.mxu0 0.0
  %170 = vmatprep.subr.mxu0 0.0
  %171 = vmatpush1.msra.mxu0 0.0
  %172 = vmatprep.subr.mxu0 0.0
  %173 = vmatpush1.msra.mxu0 0.0
  %174 = vmatprep.subr.mxu0 0.0
  %175 = vmatpush1.msra.mxu0 0.0
  %176 = vmatprep.subr.mxu0 0.0
  %177 = vmatpush1.msra.mxu0 0.0
  %178 = vmatprep.subr.mxu0 0.0
  %179 = vmatpush1.msra.mxu0 0.0
  %180 = vmatprep.subr.mxu0 0.0
  %181 = vmatpush1.msra.mxu0 0.0
  %182 = vmatprep.subr.mxu0 0.0
  %183 = vmatpush1.msra.mxu0 0.0
  %184 = vmatprep.subr.mxu0 0.0
  %185 = vmatpush1.msra.mxu0 0.0
  %186 = vmatprep.subr.mxu0 0.0
  %187 = vmatpush1.msra.mxu0 0.0
  %188 = vmatprep.subr.mxu0 0.0
  %189 = vmatpush1.msra.mxu0 0.0
  %190 = vmatprep.mubr.f32.mxu0 0.0
  %191 = vmatmul.mubr.f32.gmra.mrb[0].mxu0 %v102
  %v192 = vpop.f32.mrb[0].mxu0
  %v193 = vadd.f32 0.0, %v192
  %v194 = vpop.f32.mrb[0].mxu0
  %195 = vmatprep.mubr.f32.mxu0 0.0
  %196 = vmatmul.mubr.f32.gmra.mrb[0].mxu0 %v107
  %v197 = vpop.f32.mrb[0].mxu0
  %v198 = vadd.f32 0.0, %v197
  %v199 = vpop.f32.mrb[0].mxu0
  %200 = vdwg.mxu0
  %v201 = vld [vmem:[%s3] sm:$0x1]
  %v203 = vlaneseq
  %v204 = vshrl.u32 %v203, 7
  %v205 = vsub.s32 0, %v204
  %v206 = vrot.slane %v201, %v205
  %v208 = vadd.f32 %v17, %v206
  %v209 = vadd.f32 %v18, %v206
  %v210 = vadd.f32 %v208, %v193
  %v211 = vadd.f32 %v209, %v198
  %212 = vst [vmem:[%s4] sm:$0xff] %v210
  %213 = vst [vmem:[%s4 + $0x8] sm:$0xff] %v211
  // Predicated region
  $region18: #{hypernetwork_forward.1} parent=0 // pred_check
    _
  $region19: #{hypernetwork_forward.1} parent=0 // pred_check_branch
    %215 = sbr.rel (0) target = $region21
  $region20: #{hypernetwork_forward.1} parent=0 // pred_region
    _
  $region21: #{hypernetwork_forward.1} parent=0 // pred_fallthru
    _
  // Predicated region
  $region22: #{hypernetwork_forward.1} parent=0 // pred_check
    _
  $region23: #{hypernetwork_forward.1} parent=0 // pred_check_branch
    %217 = sbr.rel (0) target = $region25
  $region24: #{hypernetwork_forward.1} parent=0 // pred_region
    _
  $region25: #{hypernetwork_forward.1} parent=0 // pred_fallthru
    _

</llo_original>
